<compile_context>
chip_gen: v5e
topology: v5e:2x2
jax: 0.10.0
libtpu: 0.0.40
codegen_flags: <defaults>
</compile_context>

<pallas_src>
import functools

import jax
import jax.numpy as jnp
from jax import lax
from jax.experimental import pallas as pl
from jax.experimental.pallas import tpu as pltpu


_NLL_LANES = 128  # lane-dense row holding each grid step's NLL partial sum


def _round_up(x, m):
    return ((x + m - 1) // m) * m


def _cdiv(a, b):
    return -(-a // b)


def _cnn_kernel(x_ref, a_ref, bias_ref, lab_ref, smooth_ref, nll_ref, *,
                n_valid, w_valid):
    # x_ref      : (B*C, Wp)   f32/bf16  rows = n*C + ci, reflect halo already embedded
    # a_ref      : (K, C*B, B*C) f32     block-diag tap weights (resident across the grid)
    # bias_ref   : (C*B, 1)    f32       conv bias per class-major output row
    # lab_ref    : (B, Wout)   i32       labels
    # smooth_ref : (B, C, Wout)          softmax probabilities (NCW, output)
    # nll_ref    : (1, 1, 128) f32       per-block NLL partial sum (lane-dense)
    K = a_ref.shape[0]
    B, C, Wout = smooth_ref.shape

    x = x_ref[...].astype(jnp.float32)                       # (B*C, Wp)

    # ---- conv1d: one (C*B, B*C) @ (B*C, Wout) MXU matmul per tap -------------
    # Every matmul covers all B samples (M rows) and all Wout windows (lanes);
    # the taps accumulate in f32, and the tap slices x[:, k:k+Wout] are
    # transient lane-shifted views (no K-stacked rhs is materialized).
    conv = jnp.dot(a_ref[0], x[:, 0:Wout], preferred_element_type=jnp.float32)
    for k in range(1, K):
        conv = conv + jnp.dot(a_ref[k], x[:, k:k + Wout],
                              preferred_element_type=jnp.float32)
    bias_col = bias_ref[...]                                  # (C*B, 1)

    # ---- class-major softmax over contiguous per-class (B, Wout) slabs ------
    logits = [conv[o * B:(o + 1) * B, :] + bias_col[o * B:(o + 1) * B, :]
              for o in range(C)]
    m = logits[0]
    for o in range(1, C):
        m = jnp.maximum(m, logits[o])                         # class max: plain VPU
    exps = [jnp.exp(l - m) for l in logits]
    denom = exps[0]
    for o in range(1, C):
        denom = denom + exps[o]
    inv = 1.0 / denom                                         # exact (kernel is HBM-bound)

    labels = lab_ref[...]                                     # (B, Wout) int32
    picked = jnp.zeros_like(denom)
    for o in range(C):
        prob_o = exps[o] * inv                                # (B, Wout)
        # NCW relayout happens only here, at the final (lane-dense) store.
        smooth_ref[:, o, :] = prob_o.astype(smooth_ref.dtype)
        picked = jnp.where(labels == o, prob_o, picked)

    # ---- NLL: log() only the picked (label-class) probability ---------------
    row = pl.program_id(0) * B + lax.broadcasted_iota(jnp.int32, (B, Wout), 0)
    col = lax.broadcasted_iota(jnp.int32, (B, Wout), 1)
    valid = (row < n_valid) & (col < w_valid)                 # mask N / W padding
    neglogp = jnp.where(valid, -jnp.log(picked + 1e-8), 0.0)  # matches torch log(smooth+1e-8)
    total = jnp.sum(neglogp, axis=(0, 1), keepdims=True)      # (1, 1)
    nll_ref[...] = jnp.broadcast_to(total[None], (1, 1, _NLL_LANES))


def _pick_block_b(N, C, Wout, Wp, K, block_b):
    """Samples per grid step: multiple of 8, sized against a VMEM budget."""
    if block_b is None:
        # f32 bytes per sample per step: double-buffered input + output blocks
        # plus a few transient copies (tap slice, conv accumulator, class slabs).
        per_sample = 4 * (2 * C * Wp + 2 * C * Wout + 4 * C * Wout)
        block_b = (12 * 1024 * 1024) // max(per_sample, 1)
        block_b = max(8, min(128, (block_b // 8) * 8))
        # block-diag tap weights are K*(B*C)^2 f32 (x2 buffers): cap their footprint.
        while block_b > 8 and 2 * K * (block_b * C) ** 2 * 4 > 4 * 1024 * 1024:
            block_b -= 8
    assert block_b >= 8 and block_b % 8 == 0, "block_b must be a positive multiple of 8"
    B = min(block_b, _round_up(N, 8))
    # keep >=2 grid steps when N allows it, so both v7x TensorCores get work
    if N > 8 and _cdiv(N, B) < 2:
        B = max(8, _round_up(_cdiv(N, 2), 8))
    return B


def cnn_forward(base_out, labels, weight, bias, *, block_b=None, out_dtype=None):
    """base_out: (N,C,W), labels: (N,W) int, weight: (C,C,K), bias: (C,)."""
    N, C, W = base_out.shape
    Co, Ci, K = weight.shape
    assert Co == C and Ci == C
    assert K % 2 == 1, "num_features (conv kernel size) must be odd to keep W"
    pad = (K - 1) // 2
    assert W > pad, "reflect padding requires W > (K-1)//2"
    if out_dtype is None:
        out_dtype = base_out.dtype

    # ---- lane-dense geometry: pad the window axis to a multiple of 128 ------
    Wout = _round_up(W, 128)                               # output / label columns
    Wp = Wout + (_round_up(2 * pad, 128) if pad > 0 else 0)  # input columns (halo + slack)

    # ---- samples per grid step ----------------------------------------------
    B = _pick_block_b(N, C, Wout, Wp, K, block_b)
    G = _cdiv(N, B)
    Npad = G * B

    # ---- input prep: reflect halo embedded in the same padding copy ---------
    x = base_out.astype(jnp.float32)
    if pad > 0:
        left = x[:, :, 1:1 + pad][..., ::-1]               # cols pad, ..., 1
        right = x[:, :, W - 1 - pad:W - 1][..., ::-1]      # cols W-2, ..., W-1-pad
        x = jnp.concatenate([left, x, right], axis=2)      # (N, C, W + 2*pad)
    x = jnp.pad(x, ((0, Npad - N), (0, 0), (0, Wp - x.shape[2])))
    x2 = x.reshape(Npad * C, Wp)                           # row = n*C + ci (free reshape)

    lab = jnp.pad(labels.astype(jnp.int32), ((0, Npad - N), (0, Wout - W)))

    # block-diagonal per-tap weights: A[k, o*B + n, m*C + ci] = weight[o,ci,k] * (n == m)
    eye_b = jnp.eye(B, dtype=jnp.float32)
    a_blk = jnp.einsum("ock,nm->konmc", weight.astype(jnp.float32), eye_b)
    a_blk = a_blk.reshape(K, C * B, B * C)
    bias_col = jnp.repeat(bias.astype(jnp.float32), B).reshape(C * B, 1)

    kernel = functools.partial(_cnn_kernel, n_valid=N, w_valid=W)

    smooth_full, nll = pl.pallas_call(
        kernel,
        grid=(G,),
        in_specs=[
            pl.BlockSpec((B * C, Wp), lambda g: (g, 0)),             # block of B samples
            pl.BlockSpec((K, C * B, B * C), lambda g: (0, 0, 0)),    # tap weights (shared)
            pl.BlockSpec((C * B, 1), lambda g: (0, 0)),              # bias (shared)
            pl.BlockSpec((B, Wout), lambda g: (g, 0)),               # labels
        ],
        out_specs=[
            pl.BlockSpec((B, C, Wout), lambda g: (g, 0, 0)),         # smooth probs (NCW)
            pl.BlockSpec((1, 1, _NLL_LANES), lambda g: (g, 0, 0)),   # per-block NLL sum
        ],
        out_shape=[
            jax.ShapeDtypeStruct((Npad, C, Wout), out_dtype),
            jax.ShapeDtypeStruct((G, 1, _NLL_LANES), jnp.float32),
        ],
        compiler_params=pltpu.CompilerParams(
            dimension_semantics=("parallel",),
            vmem_limit_bytes=48 * 1024 * 1024,   # explicit budget; v7x only has 64 MiB VMEM
        ),
    )(x2, a_blk, bias_col, lab)

    smooth = smooth_full[:N, :, :W]
    loss = jnp.sum(nll[:, 0, 0]) / (N * W)   # NLLLoss default 'mean' over N*W
    return smooth, loss


def _reference_forward(base_out, labels, weight, bias):
    """Pure-JAX reference (no Pallas) for validation."""
    N, C, W = base_out.shape
    K = weight.shape[2]
    pad = (K - 1) // 2
    xp = jnp.pad(base_out, ((0, 0), (0, 0), (pad, pad)), mode="reflect")
    windows = jnp.stack([xp[:, :, k:k + W] for k in range(K)], axis=-1)  # (N,Ci,W,K)
    conv = jnp.einsum("oik,niwk->now", weight, windows,
                      precision="highest") + bias[None, :, None]
    prob = jax.nn.softmax(conv, axis=1)
    logp = jnp.log(prob + 1e-8)
    picked = jnp.take_along_axis(logp, labels[:, None, :].astype(jnp.int32), axis=1)
    loss = -jnp.mean(picked)
    return prob, loss


if __name__ == "__main__":
    # Small shapes consistent with the module: N batch, C=num_classes channels,
    # W windows, K=num_features (odd).  N=16 still exercises the batched grid
    # (B=8 -> 2 parallel grid steps) and the W->128 lane padding path.
    N, C, W, K = 16, 4, 16, 5

    key = jax.random.PRNGKey(0)
    k_x, k_lab, k_w, k_b = jax.random.split(key, 4)

    # base network probabilities (any positive floats work for the conv)
    base_out = jax.nn.softmax(jax.random.normal(k_x, (N, C, W), jnp.float32), axis=1)
    labels = jax.random.randint(k_lab, (N, W), 0, C, jnp.int32)

    # Deterministic Conv1d-style init: U(-bound, bound), bound = 1/sqrt(C*K)
    bound = 1.0 / jnp.sqrt(jnp.float32(C * K))
    weight = jax.random.uniform(k_w, (C, C, K), jnp.float32, -bound, bound)
    bias = jax.random.uniform(k_b, (C,), jnp.float32, -bound, bound)

    smooth, loss = cnn_forward(base_out, labels, weight, bias)
    jax.block_until_ready((smooth, loss))

    # silent correctness check against a pure-JAX reference.  The softmax
    # normalization is exact now, so tolerances are ~10x tighter than before
    # (remaining slack only covers MXU f32 matmul rounding / op ordering).
    ref_smooth, ref_loss = _reference_forward(base_out, labels, weight, bias)
    assert smooth.shape == (N, C, W)
    assert jnp.allclose(smooth, ref_smooth, rtol=0.0, atol=1e-3), \
        float(jnp.max(jnp.abs(smooth - ref_smooth)))
    assert jnp.allclose(loss, ref_loss, rtol=0.0, atol=1e-3), \
        (float(loss), float(ref_loss))
    # softmax over classes must sum to ~1
    assert jnp.allclose(jnp.sum(smooth, axis=1), 1.0, atol=1e-4)

    print("KERNEL_OK")
</pallas_src>

<mosaic_0001>
module attributes {stable_mosaic.version = 11 : i64} {
  func.func @_cnn_kernel(%arg0: i32, %arg1: memref<32x256xf32, #tpu.memory_space<vmem>>, %arg2: memref<5x32x32xf32, #tpu.memory_space<vmem>>, %arg3: memref<32x1xf32, #tpu.memory_space<vmem>>, %arg4: memref<8x128xi32, #tpu.memory_space<vmem>>, %arg5: memref<8x4x128xf32, #tpu.memory_space<vmem>>, %arg6: memref<1x1x128xf32, #tpu.memory_space<vmem>>) attributes {dimension_semantics = [#tpu.dimension_semantics<parallel>], iteration_bounds = array<i64: 2>, scalar_prefetch = 0 : i64, scratch_operands = 0 : i64, tpu.core_type = #tpu.core_type<tc>, window_params = [{transform_indices = @transform_0, window_bounds = array<i64: 32, 256>}, {pipeline_mode = #tpu.pipeline_mode<synchronous>, transform_indices = @transform_1, window_bounds = array<i64: 5, 32, 32>}, {pipeline_mode = #tpu.pipeline_mode<synchronous>, transform_indices = @transform_2, window_bounds = array<i64: 32, 1>}, {transform_indices = @transform_3, window_bounds = array<i64: 8, 128>}, {transform_indices = @transform_4, window_bounds = array<i64: 8, 4, 128>}, {transform_indices = @transform_5, window_bounds = array<i64: 1, 1, 128>}]} {
    %c0 = arith.constant 0 : index
    %c0_0 = arith.constant 0 : index
    %0 = vector.load %arg1[%c0, %c0_0] : memref<32x256xf32, #tpu.memory_space<vmem>>, vector<32x256xf32>
    %c0_1 = arith.constant 0 : index
    %c0_2 = arith.constant 0 : index
    %c0_3 = arith.constant 0 : index
    %1 = vector.load %arg2[%c0_1, %c0_2, %c0_3] : memref<5x32x32xf32, #tpu.memory_space<vmem>>, vector<1x32x32xf32>
    %2 = vector.shape_cast %1 : vector<1x32x32xf32> to vector<32x32xf32>
    %3 = vector.extract_strided_slice %0 {offsets = [0, 0], sizes = [32, 128], strides = [1, 1]} : vector<32x256xf32> to vector<32x128xf32>
    %cst = arith.constant dense<0.000000e+00> : vector<32x128xf32>
    %4 = tpu.matmul %2, %3, %cst {dimension_numbers = #tpu.dot_dimension_numbers<[1], [0], [0], [1], [0, 0, 1, 1], [], []>} : vector<32x32xf32>, vector<32x128xf32>, vector<32x128xf32> -> vector<32x128xf32>
    %c1 = arith.constant 1 : index
    %c0_4 = arith.constant 0 : index
    %c0_5 = arith.constant 0 : index
    %5 = vector.load %arg2[%c1, %c0_4, %c0_5] : memref<5x32x32xf32, #tpu.memory_space<vmem>>, vector<1x32x32xf32>
    %6 = vector.shape_cast %5 : vector<1x32x32xf32> to vector<32x32xf32>
    %7 = vector.extract_strided_slice %0 {offsets = [0, 1], sizes = [32, 128], strides = [1, 1]} : vector<32x256xf32> to vector<32x128xf32>
    %cst_6 = arith.constant dense<0.000000e+00> : vector<32x128xf32>
    %8 = tpu.matmul %6, %7, %cst_6 {dimension_numbers = #tpu.dot_dimension_numbers<[1], [0], [0], [1], [0, 0, 1, 1], [], []>} : vector<32x32xf32>, vector<32x128xf32>, vector<32x128xf32> -> vector<32x128xf32>
    %9 = arith.addf %4, %8 : vector<32x128xf32>
    %c2 = arith.constant 2 : index
    %c0_7 = arith.constant 0 : index
    %c0_8 = arith.constant 0 : index
    %10 = vector.load %arg2[%c2, %c0_7, %c0_8] : memref<5x32x32xf32, #tpu.memory_space<vmem>>, vector<1x32x32xf32>
    %11 = vector.shape_cast %10 : vector<1x32x32xf32> to vector<32x32xf32>
    %12 = vector.extract_strided_slice %0 {offsets = [0, 2], sizes = [32, 128], strides = [1, 1]} : vector<32x256xf32> to vector<32x128xf32>
    %cst_9 = arith.constant dense<0.000000e+00> : vector<32x128xf32>
    %13 = tpu.matmul %11, %12, %cst_9 {dimension_numbers = #tpu.dot_dimension_numbers<[1], [0], [0], [1], [0, 0, 1, 1], [], []>} : vector<32x32xf32>, vector<32x128xf32>, vector<32x128xf32> -> vector<32x128xf32>
    %14 = arith.addf %9, %13 : vector<32x128xf32>
    %c3 = arith.constant 3 : index
    %c0_10 = arith.constant 0 : index
    %c0_11 = arith.constant 0 : index
    %15 = vector.load %arg2[%c3, %c0_10, %c0_11] : memref<5x32x32xf32, #tpu.memory_space<vmem>>, vector<1x32x32xf32>
    %16 = vector.shape_cast %15 : vector<1x32x32xf32> to vector<32x32xf32>
    %17 = vector.extract_strided_slice %0 {offsets = [0, 3], sizes = [32, 128], strides = [1, 1]} : vector<32x256xf32> to vector<32x128xf32>
    %cst_12 = arith.constant dense<0.000000e+00> : vector<32x128xf32>
    %18 = tpu.matmul %16, %17, %cst_12 {dimension_numbers = #tpu.dot_dimension_numbers<[1], [0], [0], [1], [0, 0, 1, 1], [], []>} : vector<32x32xf32>, vector<32x128xf32>, vector<32x128xf32> -> vector<32x128xf32>
    %19 = arith.addf %14, %18 : vector<32x128xf32>
    %c4 = arith.constant 4 : index
    %c0_13 = arith.constant 0 : index
    %c0_14 = arith.constant 0 : index
    %20 = vector.load %arg2[%c4, %c0_13, %c0_14] : memref<5x32x32xf32, #tpu.memory_space<vmem>>, vector<1x32x32xf32>
    %21 = vector.shape_cast %20 : vector<1x32x32xf32> to vector<32x32xf32>
    %22 = vector.extract_strided_slice %0 {offsets = [0, 4], sizes = [32, 128], strides = [1, 1]} : vector<32x256xf32> to vector<32x128xf32>
    %cst_15 = arith.constant dense<0.000000e+00> : vector<32x128xf32>
    %23 = tpu.matmul %21, %22, %cst_15 {dimension_numbers = #tpu.dot_dimension_numbers<[1], [0], [0], [1], [0, 0, 1, 1], [], []>} : vector<32x32xf32>, vector<32x128xf32>, vector<32x128xf32> -> vector<32x128xf32>
    %24 = arith.addf %19, %23 : vector<32x128xf32>
    %c0_16 = arith.constant 0 : index
    %c0_17 = arith.constant 0 : index
    %25 = vector.load %arg3[%c0_16, %c0_17] : memref<32x1xf32, #tpu.memory_space<vmem>>, vector<32x1xf32>
    %26 = vector.extract_strided_slice %24 {offsets = [0, 0], sizes = [8, 128], strides = [1, 1]} : vector<32x128xf32> to vector<8x128xf32>
    %27 = vector.extract_strided_slice %25 {offsets = [0, 0], sizes = [8, 1], strides = [1, 1]} : vector<32x1xf32> to vector<8x1xf32>
    %28 = vector.broadcast %27 : vector<8x1xf32> to vector<8x128xf32>
    %29 = arith.addf %26, %28 : vector<8x128xf32>
    %30 = vector.extract_strided_slice %24 {offsets = [8, 0], sizes = [8, 128], strides = [1, 1]} : vector<32x128xf32> to vector<8x128xf32>
    %31 = vector.extract_strided_slice %25 {offsets = [8, 0], sizes = [8, 1], strides = [1, 1]} : vector<32x1xf32> to vector<8x1xf32>
    %32 = vector.broadcast %31 : vector<8x1xf32> to vector<8x128xf32>
    %33 = arith.addf %30, %32 : vector<8x128xf32>
    %34 = vector.extract_strided_slice %24 {offsets = [16, 0], sizes = [8, 128], strides = [1, 1]} : vector<32x128xf32> to vector<8x128xf32>
    %35 = vector.extract_strided_slice %25 {offsets = [16, 0], sizes = [8, 1], strides = [1, 1]} : vector<32x1xf32> to vector<8x1xf32>
    %36 = vector.broadcast %35 : vector<8x1xf32> to vector<8x128xf32>
    %37 = arith.addf %34, %36 : vector<8x128xf32>
    %38 = vector.extract_strided_slice %24 {offsets = [24, 0], sizes = [8, 128], strides = [1, 1]} : vector<32x128xf32> to vector<8x128xf32>
    %39 = vector.extract_strided_slice %25 {offsets = [24, 0], sizes = [8, 1], strides = [1, 1]} : vector<32x1xf32> to vector<8x1xf32>
    %40 = vector.broadcast %39 : vector<8x1xf32> to vector<8x128xf32>
    %41 = arith.addf %38, %40 : vector<8x128xf32>
    %42 = arith.maximumf %29, %33 : vector<8x128xf32>
    %43 = arith.maximumf %42, %37 : vector<8x128xf32>
    %44 = arith.maximumf %43, %41 : vector<8x128xf32>
    %45 = arith.subf %29, %44 : vector<8x128xf32>
    %46 = math.exp %45 : vector<8x128xf32>
    %47 = arith.subf %33, %44 : vector<8x128xf32>
    %48 = math.exp %47 : vector<8x128xf32>
    %49 = arith.subf %37, %44 : vector<8x128xf32>
    %50 = math.exp %49 : vector<8x128xf32>
    %51 = arith.subf %41, %44 : vector<8x128xf32>
    %52 = math.exp %51 : vector<8x128xf32>
    %53 = arith.addf %46, %48 : vector<8x128xf32>
    %54 = arith.addf %53, %50 : vector<8x128xf32>
    %55 = arith.addf %54, %52 : vector<8x128xf32>
    %cst_18 = arith.constant 1.000000e+00 : f32
    %56 = vector.broadcast %cst_18 : f32 to vector<8x128xf32>
    %57 = arith.divf %56, %55 : vector<8x128xf32>
    %c0_19 = arith.constant 0 : index
    %c0_20 = arith.constant 0 : index
    %58 = vector.load %arg4[%c0_19, %c0_20] : memref<8x128xi32, #tpu.memory_space<vmem>>, vector<8x128xi32>
    %cst_21 = arith.constant 0.000000e+00 : f32
    %59 = vector.broadcast %cst_21 : f32 to vector<8x128xf32>
    %60 = arith.mulf %46, %57 : vector<8x128xf32>
    %c0_22 = arith.constant 0 : index
    %c0_23 = arith.constant 0 : index
    %c0_24 = arith.constant 0 : index
    %61 = vector.load %arg5[%c0_22, %c0_23, %c0_24] : memref<8x4x128xf32, #tpu.memory_space<vmem>>, vector<8x1x128xf32>
    %62 = vector.shape_cast %61 : vector<8x1x128xf32> to vector<8x128xf32>
    %63 = vector.shape_cast %60 : vector<8x128xf32> to vector<8x1x128xf32>
    tpu.vector_store %arg5[%c0_22, %c0_23, %c0_24], %63 {strides = array<i32>} : memref<8x4x128xf32, #tpu.memory_space<vmem>>, vector<8x1x128xf32>,
    %c0_i32 = arith.constant 0 : i32
    %64 = vector.broadcast %c0_i32 : i32 to vector<8x128xi32>
    %65 = arith.cmpi eq, %58, %64 : vector<8x128xi32>
    %66 = arith.select %65, %60, %59 : vector<8x128xi1>, vector<8x128xf32>
    %67 = arith.mulf %48, %57 : vector<8x128xf32>
    %c0_25 = arith.constant 0 : index
    %c1_26 = arith.constant 1 : index
    %c0_27 = arith.constant 0 : index
    %68 = vector.load %arg5[%c0_25, %c1_26, %c0_27] : memref<8x4x128xf32, #tpu.memory_space<vmem>>, vector<8x1x128xf32>
    %69 = vector.shape_cast %68 : vector<8x1x128xf32> to vector<8x128xf32>
    %70 = vector.shape_cast %67 : vector<8x128xf32> to vector<8x1x128xf32>
    tpu.vector_store %arg5[%c0_25, %c1_26, %c0_27], %70 {strides = array<i32>} : memref<8x4x128xf32, #tpu.memory_space<vmem>>, vector<8x1x128xf32>,
    %c1_i32 = arith.constant 1 : i32
    %71 = vector.broadcast %c1_i32 : i32 to vector<8x128xi32>
    %72 = arith.cmpi eq, %58, %71 : vector<8x128xi32>
    %73 = arith.select %72, %67, %66 : vector<8x128xi1>, vector<8x128xf32>
    %74 = arith.mulf %50, %57 : vector<8x128xf32>
    %c0_28 = arith.constant 0 : index
    %c2_29 = arith.constant 2 : index
    %c0_30 = arith.constant 0 : index
    %75 = vector.load %arg5[%c0_28, %c2_29, %c0_30] : memref<8x4x128xf32, #tpu.memory_space<vmem>>, vector<8x1x128xf32>
    %76 = vector.shape_cast %75 : vector<8x1x128xf32> to vector<8x128xf32>
    %77 = vector.shape_cast %74 : vector<8x128xf32> to vector<8x1x128xf32>
    tpu.vector_store %arg5[%c0_28, %c2_29, %c0_30], %77 {strides = array<i32>} : memref<8x4x128xf32, #tpu.memory_space<vmem>>, vector<8x1x128xf32>,
    %c2_i32 = arith.constant 2 : i32
    %78 = vector.broadcast %c2_i32 : i32 to vector<8x128xi32>
    %79 = arith.cmpi eq, %58, %78 : vector<8x128xi32>
    %80 = arith.select %79, %74, %73 : vector<8x128xi1>, vector<8x128xf32>
    %81 = arith.mulf %52, %57 : vector<8x128xf32>
    %c0_31 = arith.constant 0 : index
    %c3_32 = arith.constant 3 : index
    %c0_33 = arith.constant 0 : index
    %82 = vector.load %arg5[%c0_31, %c3_32, %c0_33] : memref<8x4x128xf32, #tpu.memory_space<vmem>>, vector<8x1x128xf32>
    %83 = vector.shape_cast %82 : vector<8x1x128xf32> to vector<8x128xf32>
    %84 = vector.shape_cast %81 : vector<8x128xf32> to vector<8x1x128xf32>
    tpu.vector_store %arg5[%c0_31, %c3_32, %c0_33], %84 {strides = array<i32>} : memref<8x4x128xf32, #tpu.memory_space<vmem>>, vector<8x1x128xf32>,
    %c3_i32 = arith.constant 3 : i32
    %85 = vector.broadcast %c3_i32 : i32 to vector<8x128xi32>
    %86 = arith.cmpi eq, %58, %85 : vector<8x128xi32>
    %87 = arith.select %86, %81, %80 : vector<8x128xi1>, vector<8x128xf32>
    %c8_i32 = arith.constant 8 : i32
    %88 = arith.muli %arg0, %c8_i32 : i32
    %89 = tpu.iota {dimensions = array<i32: 0>} : vector<8x128xi32>
    %90 = vector.broadcast %88 : i32 to vector<8x128xi32>
    %91 = arith.addi %90, %89 : vector<8x128xi32>
    %92 = tpu.iota {dimensions = array<i32: 1>} : vector<8x128xi32>
    %c16_i32 = arith.constant 16 : i32
    %93 = vector.broadcast %c16_i32 : i32 to vector<8x128xi32>
    %94 = arith.cmpi slt, %91, %93 : vector<8x128xi32>
    %c16_i32_34 = arith.constant 16 : i32
    %95 = vector.broadcast %c16_i32_34 : i32 to vector<8x128xi32>
    %96 = arith.cmpi slt, %92, %95 : vector<8x128xi32>
    %97 = arith.andi %94, %96 : vector<8x128xi1>
    %cst_35 = arith.constant 9.99999993E-9 : f32
    %98 = vector.broadcast %cst_35 : f32 to vector<8x128xf32>
    %99 = arith.addf %87, %98 : vector<8x128xf32>
    %100 = math.log %99 : vector<8x128xf32>
    %cst_36 = arith.constant 0.000000e+00 : f32
    %101 = vector.broadcast %cst_36 : f32 to vector<8x128xf32>
    %102 = arith.subf %101, %100 : vector<8x128xf32>
    %cst_37 = arith.constant 0.000000e+00 : f32
    %103 = vector.broadcast %cst_37 : f32 to vector<8x128xf32>
    %104 = arith.select %97, %102, %103 : vector<8x128xi1>, vector<8x128xf32>
    %105 = vector.shape_cast %104 : vector<8x128xf32> to vector<1x8x128xf32>
    %cst_38 = arith.constant dense<0.000000e+00> : vector<1xf32>
    %106 = vector.multi_reduction <add>, %105, %cst_38 [1, 2] : vector<1x8x128xf32> to vector<1xf32>
    %107 = vector.shape_cast %106 : vector<1xf32> to vector<1x1x1xf32>
    %108 = vector.extract %107[0, 0, 0] : f32 from vector<1x1x1xf32>
    %109 = vector.broadcast %108 : f32 to vector<1x1xf32>
    %110 = vector.shape_cast %109 : vector<1x1xf32> to vector<1x1x1xf32>
    %111 = vector.shape_cast %110 : vector<1x1x1xf32> to vector<1x1x1xf32>
    %112 = vector.broadcast %111 : vector<1x1x1xf32> to vector<1x1x128xf32>
    %c0_39 = arith.constant 0 : index
    %c0_40 = arith.constant 0 : index
    %c0_41 = arith.constant 0 : index
    %113 = vector.load %arg6[%c0_39, %c0_40, %c0_41] : memref<1x1x128xf32, #tpu.memory_space<vmem>>, vector<1x1x128xf32>
    tpu.vector_store %arg6[%c0_39, %c0_40, %c0_41], %112 {strides = array<i32>} : memref<1x1x128xf32, #tpu.memory_space<vmem>>, vector<1x1x128xf32>,
    return
  }
  func.func @transform_0(%arg0: i32) -> (i32, i32) {
    %c0_i32 = arith.constant 0 : i32
    %c0_i32_0 = arith.constant 0 : i32
    return %arg0, %c0_i32 : i32, i32
  }
  func.func @transform_1(%arg0: i32) -> (i32, i32, i32) {
    %c0_i32 = arith.constant 0 : i32
    %c0_i32_0 = arith.constant 0 : i32
    %c0_i32_1 = arith.constant 0 : i32
    %c0_i32_2 = arith.constant 0 : i32
    return %c0_i32, %c0_i32_0, %c0_i32_1 : i32, i32, i32
  }
  func.func @transform_2(%arg0: i32) -> (i32, i32) {
    %c0_i32 = arith.constant 0 : i32
    %c0_i32_0 = arith.constant 0 : i32
    %c0_i32_1 = arith.constant 0 : i32
    return %c0_i32, %c0_i32_0 : i32, i32
  }
  func.func @transform_3(%arg0: i32) -> (i32, i32) {
    %c0_i32 = arith.constant 0 : i32
    %c0_i32_0 = arith.constant 0 : i32
    return %arg0, %c0_i32 : i32, i32
  }
  func.func @transform_4(%arg0: i32) -> (i32, i32, i32) {
    %c0_i32 = arith.constant 0 : i32
    %c0_i32_0 = arith.constant 0 : i32
    %c0_i32_1 = arith.constant 0 : i32
    return %arg0, %c0_i32, %c0_i32_0 : i32, i32, i32
  }
  func.func @transform_5(%arg0: i32) -> (i32, i32, i32) {
    %c0_i32 = arith.constant 0 : i32
    %c0_i32_0 = arith.constant 0 : i32
    %c0_i32_1 = arith.constant 0 : i32
    return %arg0, %c0_i32, %c0_i32_0 : i32, i32, i32
  }
}

</mosaic_0001>

<llo_original>
// kernel: tpu_custom_call.1
$region0: #{tpu_custom_call.1}
  #allocation0 [shape = 'u32[]', space=smem, size = 0x4, offset = 0x4, fixed_abs, tag = 'smem constant byte address 0x4 - core index']
  #allocation1 [shape = 'u32[72,128]{1,0:T(1,128)}', space=vmem, size = 0x9000, scoped, tag = 'internal scratch']
  %s0 = inlined_call_operand.hbm [shape: f32[64,256], index: 0, kind: input, shape index: {}]
  %s1 = inlined_call_operand.hbm [shape: f32[5,32,32], index: 1, kind: input, shape index: {}]
  %s2 = inlined_call_operand.vmem [shape: f32[32,1], index: 2, kind: input, shape index: {}]
  %s3 = inlined_call_operand.vmem [shape: s32[16,128], index: 3, kind: input, shape index: {}]
  %s4 = inlined_call_operand.hbm [shape: f32[16,4,128], index: 4, kind: output, shape index: {0}]
  %s5 = inlined_call_operand.hbm [shape: f32[2,1,128], index: 5, kind: output, shape index: {1}]
  %6 = xla_tuple %s4, %s5
  %s7 = sld [smem:[#allocation0]]
  $region65: #{tpu_custom_call.1} parent=0
    _
  %s9 = ssub.s32 1, %s7
  %s10 = scalar_select 0, %s9, %s7
  $region1: #{tpu_custom_call.1} parent=0
    #allocation2 [shape = 'u8[65536]{0}', space=vmem, size = 0x10000, scoped, tag = 'input window, operand 0']
    #allocation3 [shape = 's32[2]{0}', space=sflag, size = 0x8, scoped, tag = 'scoped memory for tpu_custom_call.1']
    #allocation4 [shape = 's32[2]{0}', space=sflag, size = 0x8, scoped, tag = 'scoped memory for tpu_custom_call.1']
    #allocation5 [shape = 'u8[81920]{0}', space=vmem, size = 0x14000, scoped, tag = 'input window, operand 1, single buffered']
    #allocation6 [shape = 's32[1]{0}', space=sflag, size = 0x4, scoped, tag = 'scoped memory for tpu_custom_call.1']
    #allocation7 [shape = 'u8[32768]{0}', space=vmem, size = 0x8000, scoped, tag = 'output window, operand 0']
    #allocation8 [shape = 'u8[1024]{0}', space=vmem, size = 0x400, scoped, tag = 'output window, operand 1']
    #allocation9 [shape = 's32[2]{0}', space=sflag, size = 0x8, scoped, tag = 'scoped memory for tpu_custom_call.1']
    %11 = vsyncpa [#allocation3], 0
    %s12 = scalar_lea.sflag [#allocation3], 1
    %13 = vsyncpa %s12, 0
    %14 = vsyncpa [#allocation6], 0
    %15 = vsyncpa [#allocation4], 0
    %s16 = scalar_lea.sflag [#allocation4], 1
    %17 = vsyncpa %s16, 0
    %18 = vsyncpa [#allocation9], 0
    %s19 = scalar_lea.sflag [#allocation9], 1
    %20 = vsyncpa %s19, 0
    loop: start=0, step=1, limit=4
    $region2: #{tpu_custom_call.1} parent=1 // loop_pre_header
      _
    $region3: #{tpu_custom_call.1} parent=1 // loop_header
      %s22 = sphi 0, %s26
      %p23 = scmp.ge.s32.totalorder %s22, 4
      %s32 = sphi 0, %s34
      %s35 = sphi 0, %s32
      %s36 = sphi 0, %s35
      %s52 = sphi 0, %s36
      %s56 = sphi 0, %s56
      %s58 = sphi 0, %s56
      %s59 = sphi 0, %s58
      %s73 = sphi 0, %s59
      %s77 = sphi 0, %s77
      %s79 = sphi 0, %s77
      %s80 = sphi 0, %s79
      %s94 = sphi 0, %s80
      %s100 = sphi 0, %s102
      %s103 = sphi 0, %s100
      %s104 = sphi 0, %s103
      %s120 = sphi 0, %s104
      %s126 = sphi 0, %s128
      %s129 = sphi 0, %s126
      %s130 = sphi 0, %s129
      %s146 = sphi 0, %s130
      %s152 = sphi 0, %s154
      %s155 = sphi 0, %s152
      %s156 = sphi 0, %s155
      %s172 = sphi 0, %s156
    $region4: #{tpu_custom_call.1} parent=1 // loop_header_branch
      %25 = sbr.rel (%p23) target = $region8
    $region5: #{tpu_custom_call.1} parent=1 // loop_body
      %s27 = ssub.s32 %s22, 1
      %s28 = ssub.s32 %s22, 2
      %s29 = sadd.s32 %s22, 1
      %s30 = ssub.s32 %s22, %s29
      %p31 = scmp.eq.s32.totalorder %s30, 0
      %s33 = sadd.s32 %s32, 1
      %s34 = scalar_select %p31, %s32, %s33
      %p37 = pneg %p31
      %p38 = scmp.eq.s32.totalorder %s22, 1
      %p39 = por %p37, %p38
      %p40 = scmp.ne.s32.totalorder %s32, %s35
      %p41 = scmp.eq.s32.totalorder %s22, 0
      %p42 = por %p40, %p41
      %p43 = scmp.ne.s32.totalorder %s32, %s35
      %p44 = scmp.eq.s32.totalorder %s27, 1
      %p45 = por %p43, %p44
      %p46 = scmp.ne.s32.totalorder %s35, %s36
      %p47 = scmp.eq.s32.totalorder %s27, 0
      %p48 = por %p46, %p47
      %p49 = scmp.ne.s32.totalorder %s35, %s36
      %p50 = scmp.eq.s32.totalorder %s28, 1
      %p51 = por %p49, %p50
      %p53 = scmp.ne.s32.totalorder %s36, %s52
      %p54 = scmp.eq.s32.totalorder %s28, 0
      %p55 = por %p53, %p54
      %s57 = sadd.s32 %s56, 1
      %p60 = scmp.eq.s32.totalorder %s22, 1
      %p61 = scmp.ne.s32.totalorder %s56, %s58
      %p62 = scmp.eq.s32.totalorder %s22, 0
      %p63 = por %p61, %p62
      %p64 = scmp.ne.s32.totalorder %s56, %s58
      %p65 = scmp.eq.s32.totalorder %s27, 1
      %p66 = por %p64, %p65
      %p67 = scmp.ne.s32.totalorder %s58, %s59
      %p68 = scmp.eq.s32.totalorder %s27, 0
      %p69 = por %p67, %p68
      %p70 = scmp.ne.s32.totalorder %s58, %s59
      %p71 = scmp.eq.s32.totalorder %s28, 1
      %p72 = por %p70, %p71
      %p74 = scmp.ne.s32.totalorder %s59, %s73
      %p75 = scmp.eq.s32.totalorder %s28, 0
      %p76 = por %p74, %p75
      %s78 = sadd.s32 %s77, 1
      %p81 = scmp.eq.s32.totalorder %s22, 1
      %p82 = scmp.ne.s32.totalorder %s77, %s79
      %p83 = scmp.eq.s32.totalorder %s22, 0
      %p84 = por %p82, %p83
      %p85 = scmp.ne.s32.totalorder %s77, %s79
      %p86 = scmp.eq.s32.totalorder %s27, 1
      %p87 = por %p85, %p86
      %p88 = scmp.ne.s32.totalorder %s79, %s80
      %p89 = scmp.eq.s32.totalorder %s27, 0
      %p90 = por %p88, %p89
      %p91 = scmp.ne.s32.totalorder %s79, %s80
      %p92 = scmp.eq.s32.totalorder %s28, 1
      %p93 = por %p91, %p92
      %p95 = scmp.ne.s32.totalorder %s80, %s94
      %p96 = scmp.eq.s32.totalorder %s28, 0
      %p97 = por %p95, %p96
      %s98 = ssub.s32 %s22, %s29
      %p99 = scmp.eq.s32.totalorder %s98, 0
      %s101 = sadd.s32 %s100, 1
      %s102 = scalar_select %p99, %s100, %s101
      %p105 = pneg %p99
      %p106 = scmp.eq.s32.totalorder %s22, 1
      %p107 = por %p105, %p106
      %p108 = scmp.ne.s32.totalorder %s100, %s103
      %p109 = scmp.eq.s32.totalorder %s22, 0
      %p110 = por %p108, %p109
      %p111 = scmp.ne.s32.totalorder %s100, %s103
      %p112 = scmp.eq.s32.totalorder %s27, 1
      %p113 = por %p111, %p112
      %p114 = scmp.ne.s32.totalorder %s103, %s104
      %p115 = scmp.eq.s32.totalorder %s27, 0
      %p116 = por %p114, %p115
      %p117 = scmp.ne.s32.totalorder %s103, %s104
      %p118 = scmp.eq.s32.totalorder %s28, 1
      %p119 = por %p117, %p118
      %p121 = scmp.ne.s32.totalorder %s104, %s120
      %p122 = scmp.eq.s32.totalorder %s28, 0
      %p123 = por %p121, %p122
      %s124 = ssub.s32 %s22, %s29
      %p125 = scmp.eq.s32.totalorder %s124, 0
      %s127 = sadd.s32 %s126, 1
      %s128 = scalar_select %p125, %s126, %s127
      %p131 = pneg %p125
      %p132 = scmp.eq.s32.totalorder %s22, 1
      %p133 = por %p131, %p132
      %p134 = scmp.ne.s32.totalorder %s126, %s129
      %p135 = scmp.eq.s32.totalorder %s22, 0
      %p136 = por %p134, %p135
      %p137 = scmp.ne.s32.totalorder %s126, %s129
      %p138 = scmp.eq.s32.totalorder %s27, 1
      %p139 = por %p137, %p138
      %p140 = scmp.ne.s32.totalorder %s129, %s130
      %p141 = scmp.eq.s32.totalorder %s27, 0
      %p142 = por %p140, %p141
      %p143 = scmp.ne.s32.totalorder %s129, %s130
      %p144 = scmp.eq.s32.totalorder %s28, 1
      %p145 = por %p143, %p144
      %p147 = scmp.ne.s32.totalorder %s130, %s146
      %p148 = scmp.eq.s32.totalorder %s28, 0
      %p149 = por %p147, %p148
      %s150 = ssub.s32 %s22, %s29
      %p151 = scmp.eq.s32.totalorder %s150, 0
      %s153 = sadd.s32 %s152, 1
      %s154 = scalar_select %p151, %s152, %s153
      %p157 = pneg %p151
      %p158 = scmp.eq.s32.totalorder %s22, 1
      %p159 = por %p157, %p158
      %p160 = scmp.ne.s32.totalorder %s152, %s155
      %p161 = scmp.eq.s32.totalorder %s22, 0
      %p162 = por %p160, %p161
      %p163 = scmp.ne.s32.totalorder %s152, %s155
      %p164 = scmp.eq.s32.totalorder %s27, 1
      %p165 = por %p163, %p164
      %p166 = scmp.ne.s32.totalorder %s155, %s156
      %p167 = scmp.eq.s32.totalorder %s27, 0
      %p168 = por %p166, %p167
      %p169 = scmp.ne.s32.totalorder %s155, %s156
      %p170 = scmp.eq.s32.totalorder %s28, 1
      %p171 = por %p169, %p170
      %p173 = scmp.ne.s32.totalorder %s156, %s172
      %p174 = scmp.eq.s32.totalorder %s28, 0
      %p175 = por %p173, %p174
      %p176 = scmp.le.s32.totalorder 1, %s22
      %p177 = scmp.lt.s32.totalorder %s22, 3
      %p178 = pnand %p176, %p177
      %p179 = pneg %p178
      // Predicated region
      $region9: #{tpu_custom_call.1} parent=5 // pred_check
        _
      $region10: #{tpu_custom_call.1} parent=5 // pred_check_branch
        %181 = sbr.rel (%p178) target = $region12
      $region11: #{tpu_custom_call.1} parent=5 // pred_region
        %s182 = ssub.s32 %s22, 1
        // Predicated region
        $region13: #{tpu_custom_call.1} parent=11 // pred_check
          %p183 = pneg %p69
        $region14: #{tpu_custom_call.1} parent=11 // pred_check_branch
          %185 = sbr.rel (%p183) target = $region16
        $region15: #{tpu_custom_call.1} parent=11 // pred_region
          %187 = vsyncadd [#allocation6], 0
          %s188 = sshll.u32 %s1, 4
          %s189 = int_to_ptr.hbm [resolvable:$true] %s188
          %s190 = sshll.u32 [#allocation5], 4
          %s191 = int_to_ptr.vmem [resolvable:$true] %s190
          %196 = dma.hbm_to_vmem [thread:$0]  %s189, 2560, %s191, [#allocation6], 128, 128, 8
        $region16: #{tpu_custom_call.1} parent=11 // pred_fallthru
          _
        // Predicated region
        $region17: #{tpu_custom_call.1} parent=11 // pred_check
          %p197 = pneg %p90
        $region18: #{tpu_custom_call.1} parent=11 // pred_check_branch
          %199 = sbr.rel (%p197) target = $region20
        $region19: #{tpu_custom_call.1} parent=11 // pred_region
          _
        $region20: #{tpu_custom_call.1} parent=11 // pred_fallthru
          _
      $region12: #{tpu_custom_call.1} parent=5 // pred_fallthru
        _
      %p200 = scmp.lt.s32.totalorder %s22, 2
      // Predicated region
      $region21: #{tpu_custom_call.1} parent=5 // pred_check
        %p201 = pneg %p200
      $region22: #{tpu_custom_call.1} parent=5 // pred_check_branch
        %203 = sbr.rel (%p201) target = $region24
      $region23: #{tpu_custom_call.1} parent=5 // pred_region
        // Predicated region
        $region25: #{tpu_custom_call.1} parent=23 // pred_check
          %p204 = pneg %p42
        $region26: #{tpu_custom_call.1} parent=23 // pred_check_branch
          %206 = sbr.rel (%p204) target = $region28
        $region27: #{tpu_custom_call.1} parent=23 // pred_region
          %s207 = sand.u32 %s32, 1
          %s208 = scalar_lea.sflag [#allocation3], %s207
          %s209 = sand.u32 %s32, 1
          %s210 = smul.addr %s209, 64
          %s211 = scalar_lea.vmem [#allocation2], %s210
          %s212 = smul.u32 4, %s22
          %214 = vsyncadd %s208, 0
          %s215 = smul.addr %s212, 2
          %s216 = smul.addr %s215, 8
          %s217 = scalar_lea.hbm %s0, %s216
          %s218 = sshll.u32 %s217, 4
          %s219 = int_to_ptr.hbm [resolvable:$true] %s218
          %s220 = sshll.u32 %s211, 4
          %s221 = int_to_ptr.vmem [resolvable:$true] %s220
          %226 = dma.hbm_to_vmem [thread:$0]  %s219, 1024, %s221, %s208, 256, 256, 16
        $region28: #{tpu_custom_call.1} parent=23 // pred_fallthru
          _
        // Predicated region
        $region29: #{tpu_custom_call.1} parent=23 // pred_check
          %p227 = pneg %p110
        $region30: #{tpu_custom_call.1} parent=23 // pred_check_branch
          %229 = sbr.rel (%p227) target = $region32
        $region31: #{tpu_custom_call.1} parent=23 // pred_region
          %p230 = scmp.lt.s32.totalorder %s22, 1
          %s231 = scalar_select %p230, %s22, 1
          %s232 = smul.addr %s231, 8
          %s233 = scalar_lea.vmem %s3, %s232
        $region32: #{tpu_custom_call.1} parent=23 // pred_fallthru
          _
      $region24: #{tpu_custom_call.1} parent=5 // pred_fallthru
        _
      %p234 = scmp.le.s32.totalorder 1, %s22
      %p235 = scmp.lt.s32.totalorder %s22, 3
      %p236 = pnand %p234, %p235
      %p237 = pneg %p236
      // Predicated region
      $region33: #{tpu_custom_call.1} parent=5 // pred_check
        _
      $region34: #{tpu_custom_call.1} parent=5 // pred_check_branch
        %239 = sbr.rel (%p236) target = $region36
      $region35: #{tpu_custom_call.1} parent=5 // pred_region
        %s240 = ssub.s32 %s22, 1
        %s241 = sand.u32 %s35, 1
        %s242 = scalar_lea.sflag [#allocation3], %s241
        %s243 = sand.u32 %s35, 1
        %s244 = smul.addr %s243, 64
        %s245 = scalar_lea.vmem [#allocation2], %s244
        // Predicated region
        $region37: #{tpu_custom_call.1} parent=35 // pred_check
          %p246 = pneg %p48
        $region38: #{tpu_custom_call.1} parent=35 // pred_check_branch
          %248 = sbr.rel (%p246) target = $region40
        $region39: #{tpu_custom_call.1} parent=35 // pred_region
          %250 = dma.done %s242, 1024
        $region40: #{tpu_custom_call.1} parent=35 // pred_fallthru
          _
        // Predicated region
        $region41: #{tpu_custom_call.1} parent=35 // pred_check
          %p251 = pneg %p69
        $region42: #{tpu_custom_call.1} parent=35 // pred_check_branch
          %253 = sbr.rel (%p251) target = $region44
        $region43: #{tpu_custom_call.1} parent=35 // pred_region
          %255 = dma.done [#allocation6], 2560
        $region44: #{tpu_custom_call.1} parent=35 // pred_fallthru
          _
        %s256 = sand.u32 %s35, 1
        %s257 = scalar_lea.sflag [#allocation3], %s256
        %s258 = sand.u32 %s35, 1
        %s259 = smul.addr %s258, 64
        %s260 = scalar_lea.vmem [#allocation2], %s259
        %p261 = pneg %p48
        %p262 = pneg %p45
        %p263 = pneg %p69
        %p264 = pneg %p66
        %p265 = pneg %p90
        %p266 = pneg %p87
        %p267 = scmp.lt.s32.totalorder %s27, 1
        %s268 = scalar_select %p267, %s27, 1
        %s269 = smul.addr %s268, 8
        %s270 = scalar_lea.vmem %s3, %s269
        %p271 = pneg %p116
        %p272 = pneg %p113
        %p273 = pneg %p142
        %p274 = pneg %p139
        %s275 = sand.u32 %s129, 1
        %s276 = scalar_lea.sflag [#allocation4], %s275
        %s277 = sand.u32 %s129, 1
        %s278 = smul.addr %s277, 32
        %s279 = scalar_lea.vmem [#allocation7], %s278
        %p280 = pneg %p168
        %p281 = pneg %p165
        %s282 = sand.u32 %s155, 1
        %s283 = scalar_lea.sflag [#allocation9], %s282
        %s284 = sand.u32 %s155, 1
        %s285 = scalar_lea.vmem [#allocation8], %s284
        %s286 = smul.u32 4, %s27
        %p287 = scmp.lt.s32.totalorder %s27, 1
        %s288 = scalar_select %p287, %s27, 1
        %s289 = smul.addr %s288, 8
        %s290 = scalar_lea.vmem %s3, %s289
        %s291 = smul.u32 8, %s27
        %v292 = vld [vmem:[%s245] sm:$0xff]
        %v293 = vld [vmem:[%s245 + $0x8] sm:$0xff]
        %v294 = vld [vmem:[%s245 + $0x10] sm:$0xff]
        %v295 = vld [vmem:[%s245 + $0x18] sm:$0xff]
        %v296 = vld [vmem:[%s245 + $0x20] sm:$0xff]
        %v297 = vld [vmem:[%s245 + $0x28] sm:$0xff]
        %v298 = vld [vmem:[%s245 + $0x30] sm:$0xff]
        %v299 = vld [vmem:[%s245 + $0x38] sm:$0xff]
        %v300 = vld [vmem:[#allocation5] sm:$0xff]
        %v301 = vld [vmem:[#allocation5 + $0x8] sm:$0xff]
        %v302 = vld [vmem:[#allocation5 + $0x10] sm:$0xff]
        %v303 = vld [vmem:[#allocation5 + $0x18] sm:$0xff]
        %s304 = scalar_lea.vmem [#allocation5], 32
        %v305 = vld [vmem:[%s304] sm:$0xff]
        %v306 = vld [vmem:[%s304 + $0x8] sm:$0xff]
        %v307 = vld [vmem:[%s304 + $0x10] sm:$0xff]
        %v308 = vld [vmem:[%s304 + $0x18] sm:$0xff]
        %317 = vrot.lane.b32.xlu0 %v292, 127
        %v318 = vpop.permute.xlu0 %317
        %319 = vrot.lane.b32.xlu0 %v293, 127
        %v320 = vpop.permute.xlu0 %319
        %321 = vrot.lane.b32.xlu0 %v294, 127
        %v322 = vpop.permute.xlu0 %321
        %323 = vrot.lane.b32.xlu0 %v295, 127
        %v324 = vpop.permute.xlu0 %323
        %325 = vrot.lane.b32.xlu0 %v296, 127
        %v326 = vpop.permute.xlu0 %325
        %327 = vrot.lane.b32.xlu0 %v297, 127
        %v328 = vpop.permute.xlu0 %327
        %329 = vrot.lane.b32.xlu0 %v298, 127
        %v330 = vpop.permute.xlu0 %329
        %331 = vrot.lane.b32.xlu0 %v299, 127
        %v332 = vpop.permute.xlu0 %331
        %vm333 = vcmask 1039360
        %v334 = vsel %vm333, %v318, %v320
        %v335 = vsel %vm333, %v322, %v324
        %v336 = vsel %vm333, %v326, %v328
        %v337 = vsel %vm333, %v330, %v332
        %vm342 = vcmask 261120
        %v344 = vsel %vm342, %v305, 0
        %v347 = vsel %vm342, %v306, 0
        %v350 = vsel %vm342, %v307, 0
        %v353 = vsel %vm342, %v308, 0
        %355 = vmatpush.msra.mxu0 0.0
        %356 = vmatpush.msra.mxu0 0.0
        %357 = vmatpush.msra.mxu0 0.0
        %358 = vmatpush.msra.mxu0 0.0
        %359 = vmatpush.msra.mxu0 0.0
        %360 = vmatpush.msra.mxu0 0.0
        %361 = vmatpush.msra.mxu0 0.0
        %362 = vmatpush.msra.mxu0 0.0
        %363 = vmatpush.msra.mxu0 0.0
        %364 = vmatpush.msra.mxu0 0.0
        %365 = vmatpush.msra.mxu0 0.0
        %366 = vmatpush.msra.mxu0 0.0
        %367 = vmatpush.msra.mxu0 %v337
        %368 = vmatpush.msra.mxu0 %v336
        %369 = vmatpush.msra.mxu0 %v335
        %370 = vmatpush.msra.mxu0 %v334
        %371 = vmatmul.f32.gmra.mxu0 %v344
        %v372 = vpop.f32.mrf.mxu0
        %v373 = vadd.f32 0.0, %v372
        %374 = vmatmul.f32.gmra.mxu0 %v347
        %v375 = vpop.f32.mrf.mxu0
        %v376 = vadd.f32 0.0, %v375
        %377 = vmatmul.f32.gmra.mxu0 %v350
        %v378 = vpop.f32.mrf.mxu0
        %v379 = vadd.f32 0.0, %v378
        %380 = vmatmul.f32.gmra.mxu0 %v353
        %v381 = vpop.f32.mrf.mxu0
        %v382 = vadd.f32 0.0, %v381
        %383 = vdwg.mxu0
        %v385 = vsel %vm342, %v300, 0
        %v388 = vsel %vm342, %v301, 0
        %v391 = vsel %vm342, %v302, 0
        %v394 = vsel %vm342, %v303, 0
        %396 = vmatpush.msra.mxu0 0.0
        %397 = vmatpush.msra.mxu0 0.0
        %398 = vmatpush.msra.mxu0 0.0
        %399 = vmatpush.msra.mxu0 0.0
        %400 = vmatpush.msra.mxu0 0.0
        %401 = vmatpush.msra.mxu0 0.0
        %402 = vmatpush.msra.mxu0 0.0
        %403 = vmatpush.msra.mxu0 0.0
        %404 = vmatpush.msra.mxu0 0.0
        %405 = vmatpush.msra.mxu0 0.0
        %406 = vmatpush.msra.mxu0 0.0
        %407 = vmatpush.msra.mxu0 0.0
        %408 = vmatpush.msra.mxu0 %v298
        %409 = vmatpush.msra.mxu0 %v296
        %410 = vmatpush.msra.mxu0 %v294
        %411 = vmatpush.msra.mxu0 %v292
        %412 = vmatmul.f32.gmra.mxu0 %v385
        %v413 = vpop.f32.mrf.mxu0
        %v414 = vadd.f32 %v373, %v413
        %415 = vmatmul.f32.gmra.mxu0 %v388
        %v416 = vpop.f32.mrf.mxu0
        %v417 = vadd.f32 %v376, %v416
        %418 = vmatmul.f32.gmra.mxu0 %v391
        %v419 = vpop.f32.mrf.mxu0
        %v420 = vadd.f32 %v379, %v419
        %421 = vmatmul.f32.gmra.mxu0 %v394
        %v422 = vpop.f32.mrf.mxu0
        %v423 = vadd.f32 %v382, %v422
        %424 = vdwg.mxu0
        %s425 = scalar_lea.vmem [#allocation5], 64
        %v426 = vld [vmem:[%s425] sm:$0xff]
        %v427 = vld [vmem:[%s425 + $0x8] sm:$0xff]
        %v428 = vld [vmem:[%s425 + $0x10] sm:$0xff]
        %v429 = vld [vmem:[%s425 + $0x18] sm:$0xff]
        %430 = vrot.lane.b32.xlu0 %v292, 126
        %v431 = vpop.permute.xlu0 %430
        %432 = vrot.lane.b32.xlu0 %v293, 126
        %v433 = vpop.permute.xlu0 %432
        %434 = vrot.lane.b32.xlu0 %v294, 126
        %v435 = vpop.permute.xlu0 %434
        %436 = vrot.lane.b32.xlu0 %v295, 126
        %v437 = vpop.permute.xlu0 %436
        %438 = vrot.lane.b32.xlu0 %v296, 126
        %v439 = vpop.permute.xlu0 %438
        %440 = vrot.lane.b32.xlu0 %v297, 126
        %v441 = vpop.permute.xlu0 %440
        %442 = vrot.lane.b32.xlu0 %v298, 126
        %v443 = vpop.permute.xlu0 %442
        %444 = vrot.lane.b32.xlu0 %v299, 126
        %v445 = vpop.permute.xlu0 %444
        %vm446 = vcmask 1031168
        %v447 = vsel %vm446, %v431, %v433
        %v448 = vsel %vm446, %v435, %v437
        %v449 = vsel %vm446, %v439, %v441
        %v450 = vsel %vm446, %v443, %v445
        %v456 = vsel %vm342, %v426, 0
        %v459 = vsel %vm342, %v427, 0
        %v462 = vsel %vm342, %v428, 0
        %v465 = vsel %vm342, %v429, 0
        %467 = vmatpush.msra.mxu0 0.0
        %468 = vmatpush.msra.mxu0 0.0
        %469 = vmatpush.msra.mxu0 0.0
        %470 = vmatpush.msra.mxu0 0.0
        %471 = vmatpush.msra.mxu0 0.0
        %472 = vmatpush.msra.mxu0 0.0
        %473 = vmatpush.msra.mxu0 0.0
        %474 = vmatpush.msra.mxu0 0.0
        %475 = vmatpush.msra.mxu0 0.0
        %476 = vmatpush.msra.mxu0 0.0
        %477 = vmatpush.msra.mxu0 0.0
        %478 = vmatpush.msra.mxu0 0.0
        %479 = vmatpush.msra.mxu0 %v450
        %480 = vmatpush.msra.mxu0 %v449
        %481 = vmatpush.msra.mxu0 %v448
        %482 = vmatpush.msra.mxu0 %v447
        %483 = vmatmul.f32.gmra.mxu0 %v456
        %v484 = vpop.f32.mrf.mxu0
        %v485 = vadd.f32 0.0, %v484
        %486 = vmatmul.f32.gmra.mxu0 %v459
        %v487 = vpop.f32.mrf.mxu0
        %v488 = vadd.f32 0.0, %v487
        %489 = vmatmul.f32.gmra.mxu0 %v462
        %v490 = vpop.f32.mrf.mxu0
        %v491 = vadd.f32 0.0, %v490
        %492 = vmatmul.f32.gmra.mxu0 %v465
        %v493 = vpop.f32.mrf.mxu0
        %v494 = vadd.f32 0.0, %v493
        %495 = vdwg.mxu0
        %v496 = vadd.f32 %v414, %v485
        %v497 = vadd.f32 %v417, %v488
        %v498 = vadd.f32 %v420, %v491
        %v499 = vadd.f32 %v423, %v494
        %s500 = scalar_lea.vmem [#allocation5], 96
        %v501 = vld [vmem:[%s500] sm:$0xff]
        %v502 = vld [vmem:[%s500 + $0x8] sm:$0xff]
        %v503 = vld [vmem:[%s500 + $0x10] sm:$0xff]
        %v504 = vld [vmem:[%s500 + $0x18] sm:$0xff]
        %505 = vrot.lane.b32.xlu0 %v292, 125
        %v506 = vpop.permute.xlu0 %505
        %507 = vrot.lane.b32.xlu0 %v293, 125
        %v508 = vpop.permute.xlu0 %507
        %509 = vrot.lane.b32.xlu0 %v294, 125
        %v510 = vpop.permute.xlu0 %509
        %511 = vrot.lane.b32.xlu0 %v295, 125
        %v512 = vpop.permute.xlu0 %511
        %513 = vrot.lane.b32.xlu0 %v296, 125
        %v514 = vpop.permute.xlu0 %513
        %515 = vrot.lane.b32.xlu0 %v297, 125
        %v516 = vpop.permute.xlu0 %515
        %517 = vrot.lane.b32.xlu0 %v298, 125
        %v518 = vpop.permute.xlu0 %517
        %519 = vrot.lane.b32.xlu0 %v299, 125
        %v520 = vpop.permute.xlu0 %519
        %vm521 = vcmask 1022976
        %v522 = vsel %vm521, %v506, %v508
        %v523 = vsel %vm521, %v510, %v512
        %v524 = vsel %vm521, %v514, %v516
        %v525 = vsel %vm521, %v518, %v520
        %v531 = vsel %vm342, %v501, 0
        %v534 = vsel %vm342, %v502, 0
        %v537 = vsel %vm342, %v503, 0
        %v540 = vsel %vm342, %v504, 0
        %542 = vmatpush.msra.mxu0 0.0
        %543 = vmatpush.msra.mxu0 0.0
        %544 = vmatpush.msra.mxu0 0.0
        %545 = vmatpush.msra.mxu0 0.0
        %546 = vmatpush.msra.mxu0 0.0
        %547 = vmatpush.msra.mxu0 0.0
        %548 = vmatpush.msra.mxu0 0.0
        %549 = vmatpush.msra.mxu0 0.0
        %550 = vmatpush.msra.mxu0 0.0
        %551 = vmatpush.msra.mxu0 0.0
        %552 = vmatpush.msra.mxu0 0.0
        %553 = vmatpush.msra.mxu0 0.0
        %554 = vmatpush.msra.mxu0 %v525
        %555 = vmatpush.msra.mxu0 %v524
        %556 = vmatpush.msra.mxu0 %v523
        %557 = vmatpush.msra.mxu0 %v522
        %558 = vmatmul.f32.gmra.mxu0 %v531
        %v559 = vpop.f32.mrf.mxu0
        %v560 = vadd.f32 0.0, %v559
        %561 = vmatmul.f32.gmra.mxu0 %v534
        %v562 = vpop.f32.mrf.mxu0
        %v563 = vadd.f32 0.0, %v562
        %564 = vmatmul.f32.gmra.mxu0 %v537
        %v565 = vpop.f32.mrf.mxu0
        %v566 = vadd.f32 0.0, %v565
        %567 = vmatmul.f32.gmra.mxu0 %v540
        %v568 = vpop.f32.mrf.mxu0
        %v569 = vadd.f32 0.0, %v568
        %570 = vdwg.mxu0
        %v571 = vadd.f32 %v496, %v560
        %v572 = vadd.f32 %v497, %v563
        %v573 = vadd.f32 %v498, %v566
        %v574 = vadd.f32 %v499, %v569
        %s575 = scalar_lea.vmem [#allocation5], 128
        %v576 = vld [vmem:[%s575] sm:$0xff]
        %v577 = vld [vmem:[%s575 + $0x8] sm:$0xff]
        %v578 = vld [vmem:[%s575 + $0x10] sm:$0xff]
        %v579 = vld [vmem:[%s575 + $0x18] sm:$0xff]
        %580 = vrot.lane.b32.xlu0 %v292, 124
        %v581 = vpop.permute.xlu0 %580
        %582 = vrot.lane.b32.xlu0 %v293, 124
        %v583 = vpop.permute.xlu0 %582
        %584 = vrot.lane.b32.xlu0 %v294, 124
        %v585 = vpop.permute.xlu0 %584
        %586 = vrot.lane.b32.xlu0 %v295, 124
        %v587 = vpop.permute.xlu0 %586
        %588 = vrot.lane.b32.xlu0 %v296, 124
        %v589 = vpop.permute.xlu0 %588
        %590 = vrot.lane.b32.xlu0 %v297, 124
        %v591 = vpop.permute.xlu0 %590
        %592 = vrot.lane.b32.xlu0 %v298, 124
        %v593 = vpop.permute.xlu0 %592
        %594 = vrot.lane.b32.xlu0 %v299, 124
        %v595 = vpop.permute.xlu0 %594
        %vm596 = vcmask 1014784
        %v597 = vsel %vm596, %v581, %v583
        %v598 = vsel %vm596, %v585, %v587
        %v599 = vsel %vm596, %v589, %v591
        %v600 = vsel %vm596, %v593, %v595
        %v606 = vsel %vm342, %v576, 0
        %v609 = vsel %vm342, %v577, 0
        %v612 = vsel %vm342, %v578, 0
        %v615 = vsel %vm342, %v579, 0
        %617 = vmatpush.msra.mxu0 0.0
        %618 = vmatpush.msra.mxu0 0.0
        %619 = vmatpush.msra.mxu0 0.0
        %620 = vmatpush.msra.mxu0 0.0
        %621 = vmatpush.msra.mxu0 0.0
        %622 = vmatpush.msra.mxu0 0.0
        %623 = vmatpush.msra.mxu0 0.0
        %624 = vmatpush.msra.mxu0 0.0
        %625 = vmatpush.msra.mxu0 0.0
        %626 = vmatpush.msra.mxu0 0.0
        %627 = vmatpush.msra.mxu0 0.0
        %628 = vmatpush.msra.mxu0 0.0
        %629 = vmatpush.msra.mxu0 %v600
        %630 = vmatpush.msra.mxu0 %v599
        %631 = vmatpush.msra.mxu0 %v598
        %632 = vmatpush.msra.mxu0 %v597
        %633 = vmatmul.f32.gmra.mxu0 %v606
        %v634 = vpop.f32.mrf.mxu0
        %v635 = vadd.f32 0.0, %v634
        %636 = vmatmul.f32.gmra.mxu0 %v609
        %v637 = vpop.f32.mrf.mxu0
        %v638 = vadd.f32 0.0, %v637
        %639 = vmatmul.f32.gmra.mxu0 %v612
        %v640 = vpop.f32.mrf.mxu0
        %v641 = vadd.f32 0.0, %v640
        %642 = vmatmul.f32.gmra.mxu0 %v615
        %v643 = vpop.f32.mrf.mxu0
        %v644 = vadd.f32 0.0, %v643
        %645 = vdwg.mxu0
        %v646 = vadd.f32 %v571, %v635
        %v647 = vadd.f32 %v572, %v638
        %v648 = vadd.f32 %v573, %v641
        %v649 = vadd.f32 %v574, %v644
        %v650 = vld [vmem:[%s2] sm:$0xff]
        %v651 = vld [vmem:[%s2 + $0x8] sm:$0xff]
        %v652 = vld [vmem:[%s2 + $0x10] sm:$0xff]
        %v653 = vld [vmem:[%s2 + $0x18] sm:$0xff]
        %655 = vset.pattern.permute.xlu0 0
        %656 = vperm.xlu0 %655, %v650
        %v657 = vpop.permute.xlu0 %656
        %v659 = vadd.f32 %v646, %v657
        %661 = vset.pattern.permute.xlu0 0
        %662 = vperm.xlu0 %661, %v651
        %v663 = vpop.permute.xlu0 %662
        %v665 = vadd.f32 %v647, %v663
        %667 = vset.pattern.permute.xlu0 0
        %668 = vperm.xlu0 %667, %v652
        %v669 = vpop.permute.xlu0 %668
        %v671 = vadd.f32 %v648, %v669
        %673 = vset.pattern.permute.xlu0 0
        %674 = vperm.xlu0 %673, %v653
        %v675 = vpop.permute.xlu0 %674
        %v677 = vadd.f32 %v649, %v675
        %v678 = vmax.f32 %v659, %v665
        %v679 = vmax.f32 %v678, %v671
        %v680 = vmax.f32 %v679, %v677
        %v681 = vsub.f32 %v659, %v680
        %v682 = vmul.f32 %v681, 1.442695
        %v683 = vpow.pop %v682
        %v684 = vsub.f32 %v665, %v680
        %v685 = vmul.f32 %v684, 1.442695
        %v686 = vpow.pop %v685
        %v687 = vsub.f32 %v671, %v680
        %v688 = vmul.f32 %v687, 1.442695
        %v689 = vpow.pop %v688
        %v690 = vsub.f32 %v677, %v680
        %v691 = vmul.f32 %v690, 1.442695
        %v692 = vpow.pop %v691
        %v693 = vadd.f32 %v683, %v686
        %v694 = vadd.f32 %v693, %v689
        %v695 = vadd.f32 %v694, %v692
        %v696 = vrcp.pop %v695
        %v697 = vmul.f32 %v695, %v696
        %v698 = vsub.f32 1.0, %v697
        %v699 = vmul.f32 %v696, %v698
        %v700 = vadd.f32 %v696, %v699
        %vm701 = vweird.f32 %v695
        %vm702 = vweird.f32 %v696
        %vm703 = vmor %vm701, %vm702
        %v704 = vsel %vm703, %v696, %v700
        %v705 = vand.u32 2147483647, %v695
        %vm706 = vcmp.eq.f32.partialorder %v705, 8.507059e+37
        %v707 = vand.u32 %v695, 2147483648
        %v708 = vor.u32 1.1754944e-38, %v707
        %v709 = vsel %vm706, %v708, %v704
        %v710 = vmul.f32 1.0, %v709
        %v711 = vld [vmem:[%s290] sm:$0xff]
        %v712 = vmul.f32 %v683, %v710
        %v714 = vrot.slane %v712, 1
        %v715 = vrot.slane %v712, 2
        %v716 = vrot.slane %v712, 3
        %v717 = vrot.slane %v712, 4
        %v718 = vrot.slane %v712, 5
        %v719 = vrot.slane %v712, 6
        %v720 = vrot.slane %v712, 7
        %728 = vst [vmem:[%s279] sm:$0x1] %v712
        %729 = vst [vmem:[%s279 + $0x4] sm:$0x1] %v714
        %730 = vst [vmem:[%s279 + $0x8] sm:$0x1] %v715
        %731 = vst [vmem:[%s279 + $0xc] sm:$0x1] %v716
        %732 = vst [vmem:[%s279 + $0x10] sm:$0x1] %v717
        %733 = vst [vmem:[%s279 + $0x14] sm:$0x1] %v718
        %734 = vst [vmem:[%s279 + $0x18] sm:$0x1] %v719
        %735 = vst [vmem:[%s279 + $0x1c] sm:$0x1] %v720
        %vm736 = vcmp.eq.s32.totalorder %v711, 0
        %v737 = vsel %vm736, %v712, 0.0
        %v738 = vmul.f32 %v686, %v710
        %v740 = vrot.slane %v738, 1
        %v741 = vrot.slane %v738, 2
        %v742 = vrot.slane %v738, 3
        %v743 = vrot.slane %v738, 4
        %v744 = vrot.slane %v738, 5
        %v745 = vrot.slane %v738, 6
        %v746 = vrot.slane %v738, 7
        %754 = vst [vmem:[%s279 + $0x1] sm:$0x1] %v738
        %755 = vst [vmem:[%s279 + $0x5] sm:$0x1] %v740
        %756 = vst [vmem:[%s279 + $0x9] sm:$0x1] %v741
        %757 = vst [vmem:[%s279 + $0xd] sm:$0x1] %v742
        %758 = vst [vmem:[%s279 + $0x11] sm:$0x1] %v743
        %759 = vst [vmem:[%s279 + $0x15] sm:$0x1] %v744
        %760 = vst [vmem:[%s279 + $0x19] sm:$0x1] %v745
        %761 = vst [vmem:[%s279 + $0x1d] sm:$0x1] %v746
        %vm762 = vcmp.eq.s32.totalorder %v711, 1
        %v763 = vsel %vm762, %v738, %v737
        %v764 = vmul.f32 %v689, %v710
        %v766 = vrot.slane %v764, 1
        %v767 = vrot.slane %v764, 2
        %v768 = vrot.slane %v764, 3
        %v769 = vrot.slane %v764, 4
        %v770 = vrot.slane %v764, 5
        %v771 = vrot.slane %v764, 6
        %v772 = vrot.slane %v764, 7
        %780 = vst [vmem:[%s279 + $0x2] sm:$0x1] %v764
        %781 = vst [vmem:[%s279 + $0x6] sm:$0x1] %v766
        %782 = vst [vmem:[%s279 + $0xa] sm:$0x1] %v767
        %783 = vst [vmem:[%s279 + $0xe] sm:$0x1] %v768
        %784 = vst [vmem:[%s279 + $0x12] sm:$0x1] %v769
        %785 = vst [vmem:[%s279 + $0x16] sm:$0x1] %v770
        %786 = vst [vmem:[%s279 + $0x1a] sm:$0x1] %v771
        %787 = vst [vmem:[%s279 + $0x1e] sm:$0x1] %v772
        %vm788 = vcmp.eq.s32.totalorder %v711, 2
        %v789 = vsel %vm788, %v764, %v763
        %v790 = vmul.f32 %v692, %v710
        %v792 = vrot.slane %v790, 1
        %v793 = vrot.slane %v790, 2
        %v794 = vrot.slane %v790, 3
        %v795 = vrot.slane %v790, 4
        %v796 = vrot.slane %v790, 5
        %v797 = vrot.slane %v790, 6
        %v798 = vrot.slane %v790, 7
        %806 = vst [vmem:[%s279 + $0x3] sm:$0x1] %v790
        %807 = vst [vmem:[%s279 + $0x7] sm:$0x1] %v792
        %808 = vst [vmem:[%s279 + $0xb] sm:$0x1] %v793
        %809 = vst [vmem:[%s279 + $0xf] sm:$0x1] %v794
        %810 = vst [vmem:[%s279 + $0x13] sm:$0x1] %v795
        %811 = vst [vmem:[%s279 + $0x17] sm:$0x1] %v796
        %812 = vst [vmem:[%s279 + $0x1b] sm:$0x1] %v797
        %813 = vst [vmem:[%s279 + $0x1f] sm:$0x1] %v798
        %vm814 = vcmp.eq.s32.totalorder %v711, 3
        %v815 = vsel %vm814, %v790, %v789
        %s816 = smul.u32 %s27, 8
        %v817 = vlaneseq
        %v818 = vshrl.u32 %v817, 7
        %v819 = vstv %s816
        %v820 = vadd.s32 %v819, %v818
        %v821 = vlaneseq
        %v822 = vand.u32 %v821, 127
        %vm823 = vcmp.lt.s32.totalorder %v820, 16
        %vm824 = vcmp.lt.s32.totalorder %v822, 16
        %vm825 = vmand %vm823, %vm824
        %v826 = vadd.f32 %v815, 1e-08
        %v827 = vlog2.pop %v826
        %v828 = vmul.f32 %v827, 0.6931472
        %v829 = vsub.f32 0.0, %v828
        %v830 = vsel %vm825, %v829, 0.0
        %831 = vadd.xlane.f32.xlu0 %v830
        %v832 = vpop.xlane.xlu0 %831
        %v833 = vrot.slane %v832, 4
        %v834 = vadd.f32 %v832, %v833
        %v835 = vrot.slane %v834, 2
        %v836 = vadd.f32 %v834, %v835
        %v837 = vrot.slane %v836, 1
        %v838 = vadd.f32 %v836, %v837
        %s839 = vtos %v838
        %v840 = vstv %s839
        %841 = vst [vmem:[%s285] sm:$0x1] %v840
        %s842 = sand.u32 %s129, 1
        %s843 = scalar_lea.sflag [#allocation4], %s842
        %s844 = sand.u32 %s129, 1
        %s845 = smul.addr %s844, 32
        %s846 = scalar_lea.vmem [#allocation7], %s845
        %s847 = sand.u32 %s155, 1
        %s848 = scalar_lea.sflag [#allocation9], %s847
        %s849 = sand.u32 %s155, 1
        %s850 = scalar_lea.vmem [#allocation8], %s849
        // Predicated region
        $region45: #{tpu_custom_call.1} parent=35 // pred_check
          %p851 = pneg %p139
        $region46: #{tpu_custom_call.1} parent=35 // pred_check_branch
          %853 = sbr.rel (%p851) target = $region48
        $region47: #{tpu_custom_call.1} parent=35 // pred_region
          %s854 = smul.u32 8, %s27
          %856 = vsyncadd %s843, 0
          %s857 = smul.addr %s854, 4
          %s858 = scalar_lea.hbm %s4, %s857
          %s859 = sshll.u32 %s846, 4
          %s860 = int_to_ptr.vmem [resolvable:$true] %s859
          %s861 = sshll.u32 %s858, 4
          %s862 = int_to_ptr.hbm [resolvable:$true] %s861
          %867 = dma.vmem_to_hbm [thread:$0]  %s860, 512, %s862, %s843, 64, 64, 4
        $region48: #{tpu_custom_call.1} parent=35 // pred_fallthru
          _
        // Predicated region
        $region49: #{tpu_custom_call.1} parent=35 // pred_check
          %p868 = pneg %p165
        $region50: #{tpu_custom_call.1} parent=35 // pred_check_branch
          %870 = sbr.rel (%p868) target = $region52
        $region51: #{tpu_custom_call.1} parent=35 // pred_region
          %872 = vsyncadd %s848, 0
          %s873 = scalar_lea.hbm %s5, %s27
          %s875 = sshll.u32 %s850, 4
          %s876 = int_to_ptr.vmem [resolvable:$true] %s875
          %s877 = sshll.u32 %s873, 4
          %s878 = int_to_ptr.hbm [resolvable:$true] %s877
          %880 = dma.vmem_to_hbm [thread:$0]  %s876, 16, %s878, %s848
        $region52: #{tpu_custom_call.1} parent=35 // pred_fallthru
          _
      $region36: #{tpu_custom_call.1} parent=5 // pred_fallthru
        _
      %p881 = scmp.le.s32.totalorder 2, %s22
      // Predicated region
      $region53: #{tpu_custom_call.1} parent=5 // pred_check
        %p882 = pneg %p881
      $region54: #{tpu_custom_call.1} parent=5 // pred_check_branch
        %884 = sbr.rel (%p882) target = $region56
      $region55: #{tpu_custom_call.1} parent=5 // pred_region
        %s885 = ssub.s32 %s22, 2
        // Predicated region
        $region57: #{tpu_custom_call.1} parent=55 // pred_check
          %p886 = pneg %p145
        $region58: #{tpu_custom_call.1} parent=55 // pred_check_branch
          %888 = sbr.rel (%p886) target = $region60
        $region59: #{tpu_custom_call.1} parent=55 // pred_region
          %s889 = sand.u32 %s130, 1
          %s890 = scalar_lea.sflag [#allocation4], %s889
          %s891 = sand.u32 %s130, 1
          %s892 = smul.addr %s891, 32
          %s893 = scalar_lea.vmem [#allocation7], %s892
          %895 = dma.done %s890, 512
        $region60: #{tpu_custom_call.1} parent=55 // pred_fallthru
          _
        // Predicated region
        $region61: #{tpu_custom_call.1} parent=55 // pred_check
          %p896 = pneg %p171
        $region62: #{tpu_custom_call.1} parent=55 // pred_check_branch
          %898 = sbr.rel (%p896) target = $region64
        $region63: #{tpu_custom_call.1} parent=55 // pred_region
          %s899 = sand.u32 %s156, 1
          %s900 = scalar_lea.sflag [#allocation9], %s899
          %s901 = sand.u32 %s156, 1
          %s902 = scalar_lea.vmem [#allocation8], %s901
          %904 = dma.done %s900, 16
        $region64: #{tpu_custom_call.1} parent=55 // pred_fallthru
          _
      $region56: #{tpu_custom_call.1} parent=5 // pred_fallthru
        _
    $region6: #{tpu_custom_call.1} parent=1 // loop_footer
      %s26 = sadd.s32 1, %s22
    $region7: #{tpu_custom_call.1} parent=1 // loop_footer_branch
      %21 = sbr.rel target = $region3
    $region8: #{tpu_custom_call.1} parent=1 // loop_exit
      _
    %905 = vsyncpa [#allocation3], 1
    %s906 = scalar_lea.sflag [#allocation3], 1
    %907 = vsyncpa %s906, 1
    %908 = vsyncpa [#allocation6], 1
    %909 = vsyncpa [#allocation4], 1
    %s910 = scalar_lea.sflag [#allocation4], 1
    %911 = vsyncpa %s910, 1
    %912 = vsyncpa [#allocation9], 1
    %s913 = scalar_lea.sflag [#allocation9], 1
    %914 = vsyncpa %s913, 1

</llo_original>
